<compile_context>
chip_gen: v7x
topology: tpu7x:2x2x1
jax: 0.10.0
libtpu: 0.0.40
codegen_flags: <defaults>
</compile_context>

<pallas_src>
import functools
import math

import jax
import jax.numpy as jnp
from jax.experimental import pallas as pl
from jax.experimental.pallas import tpu as pltpu


# ---------------------------------------------------------------------------
# Helpers
# ---------------------------------------------------------------------------

def _vmem_limit_bytes() -> int:
    """Generation-aware scoped-VMEM limit (leave >=16 MiB compiler headroom)."""
    try:
        cap = int(pltpu.get_tpu_info().vmem_capacity_bytes)
    except Exception:  # conservative fallback (works on every generation)
        cap = 64 * 1024 * 1024
    return int(min(max(cap - 16 * 1024 * 1024, 32 * 1024 * 1024),
                   100 * 1024 * 1024))


def _largest_divisor_tile(s: int, cap: int) -> int:
    """Largest 'nice' tile <= cap that divides s (falls back to s itself)."""
    for t in (512, 256, 128, 64, 32, 16, 8):
        if t <= cap and t <= s and s % t == 0:
            return t
    return s


def _const_spec(shape, single_buffer: bool) -> pl.BlockSpec:
    """BlockSpec with a constant index map (weight/bias resident across grid)."""
    zeros = (0,) * len(shape)
    index_map = lambda *args, _z=zeros: _z
    if single_buffer:
        # Constant index maps gain nothing from double buffering; halving the
        # resident weight VMEM matters on v7x (64 MiB/TC) for large d_model.
        return pl.BlockSpec(shape, index_map, pipeline_mode=pl.Buffered(1))
    return pl.BlockSpec(shape, index_map)


# ---------------------------------------------------------------------------
# Kernel 1: fused Linear projection(s) -> head-major (H, tq, d_k) outputs.
# ---------------------------------------------------------------------------

def _proj_heads_kernel(n_head, x_ref, w_ref, b_ref, *out_refs):
    """One (tq, D) row-slab through 1..3 fused Linear projections.

    x_ref: (tq, D) f32 (cast to bf16 in-kernel); w_ref: (D, n_out*D) bf16;
    b_ref: (1, n_out*D) f32.  out_refs[i]: (H, tq, d_k) bf16, head-major.
    """
    tq, d_model = x_ref.shape
    d_k = d_model // n_head
    x = x_ref[...].astype(jnp.bfloat16)                 # f32 -> bf16 in-kernel
    acc = jnp.dot(x, w_ref[...], preferred_element_type=jnp.float32)
    acc = acc + b_ref[...]                              # f32 bias add
    for idx, o_ref in enumerate(out_refs):              # static unroll (<= 3)
        chunk = acc[:, idx * d_model:(idx + 1) * d_model]            # (tq, D)
        heads = jnp.swapaxes(chunk.reshape(tq, n_head, d_k), 0, 1)   # (H,tq,dk)
        o_ref[...] = heads.astype(o_ref.dtype)


def _project_heads(x, w_cat, b_cat, n_out, n_head, tq, vmem_limit, single_buf_w):
    """Launch kernel 1: x (B,S,D) -> n_out arrays of shape (B, H, S, d_k) bf16."""
    B, S, D = x.shape
    d_k = D // n_head
    x_spec = pl.BlockSpec((pl.Squeezed(), tq, D), lambda b, i: (b, i, 0))
    w_spec = _const_spec((D, n_out * D), single_buf_w)
    b_spec = _const_spec((1, n_out * D), single_buf_w)
    out_spec = pl.BlockSpec((pl.Squeezed(), n_head, tq, d_k),
                            lambda b, i: (b, 0, i, 0))
    out_shape = tuple(jax.ShapeDtypeStruct((B, n_head, S, d_k), jnp.bfloat16)
                      for _ in range(n_out))
    outs = pl.pallas_call(
        functools.partial(_proj_heads_kernel, n_head),
        out_shape=out_shape,
        grid_spec=pltpu.PrefetchScalarGridSpec(
            num_scalar_prefetch=0,
            grid=(B, S // tq),
            in_specs=[x_spec, w_spec, b_spec],
            out_specs=tuple(out_spec for _ in range(n_out)),
        ),
        compiler_params=pltpu.CompilerParams(
            dimension_semantics=("parallel", "parallel"),
            vmem_limit_bytes=vmem_limit),
    )(x, w_cat, b_cat)
    return tuple(outs)


# ---------------------------------------------------------------------------
# Kernel 2: flash attention (online softmax over KV tiles) fused with the
#           head combine and the output projection.
# ---------------------------------------------------------------------------

def _flash_attn_kernel(q_ref, k_ref, v_ref, wo_ref, bo_ref,
                       o_ref, m_sc, l_sc, acc_sc):
    ki = pl.program_id(2)

    @pl.when(ki == 0)
    def _():
        m_sc[...] = jnp.full_like(m_sc, -jnp.inf)
        l_sc[...] = jnp.zeros_like(l_sc)
        acc_sc[...] = jnp.zeros_like(acc_sc)

    # Head-major blocks straight from kernel 1: q (H,tq,d_k), k/v (H,tk,d_k).
    # The 1/sqrt(d_k) scale is already folded into the Q projection weights.
    # TODO(synk): optional attention mask (mask=None path only) is not plumbed
    # in; if added, guard alpha against fully-masked rows (-inf - -inf = nan).
    # TODO(synk): for d_k < 128, zero-padding the head dim would restore
    # lane-dense MXU operands; not done here.
    s = jnp.einsum("hqd,hkd->hqk", q_ref[...], k_ref[...],
                   preferred_element_type=jnp.float32)        # (H, tq, tk) f32

    # Online (flash) softmax update, all in f32.
    m_prev = m_sc[...]
    m_new = jnp.maximum(m_prev, jnp.max(s, axis=-1, keepdims=True))
    alpha = jnp.exp(m_prev - m_new)
    p = jnp.exp(s - m_new)
    l_sc[...] = alpha * l_sc[...] + jnp.sum(p, axis=-1, keepdims=True)
    acc_sc[...] = alpha * acc_sc[...] + jnp.einsum(
        "hqk,hkd->hqd", p.astype(jnp.bfloat16), v_ref[...],
        preferred_element_type=jnp.float32)
    m_sc[...] = m_new

    @pl.when(ki == pl.num_programs(2) - 1)
    def _():
        n_head, tq, d_k = acc_sc.shape
        # Intentional: EUP approx reciprocal (~1e-3 rel err) for the softmax
        # denominator; switch to approx=False for tighter PyTorch parity.
        out_h = acc_sc[...] * pl.reciprocal(l_sc[...], approx=True)  # (H,tq,dk)
        combined = jnp.swapaxes(out_h, 0, 1).reshape(tq, n_head * d_k)
        out = jnp.dot(combined.astype(jnp.bfloat16), wo_ref[...],
                      preferred_element_type=jnp.float32) + bo_ref[...]
        o_ref[...] = out.astype(o_ref.dtype)


# ---------------------------------------------------------------------------
# Wrapper
# ---------------------------------------------------------------------------

def multi_head_attention(query, key, value, params, n_head, *,
                         tq=None, tk=None, out_dtype=None):
    """query/key/value: (B, S, D) float32. params: (D,D) weights, (1,D) biases."""
    B, S, D = query.shape
    assert key.shape == (B, S, D) and value.shape == (B, S, D)
    assert D % n_head == 0, "d_model must be divisible by n_head"
    d_k = D // n_head
    scale = 1.0 / math.sqrt(d_k)
    out_dtype = query.dtype if out_dtype is None else out_dtype

    bf16, f32 = jnp.bfloat16, jnp.float32
    vmem_limit = _vmem_limit_bytes()
    # Single-buffer the constant-index-map weights only when a second pipeline
    # buffer actually costs meaningful VMEM (D >= ~2048, i.e. >= 8 MiB/weight).
    single_buf_w = (D * D * 2) >= (8 << 20)

    # ---- Tile selection (VMEM-capacity aware; always divisors of S) --------
    if tq is None:
        tq = _largest_divisor_tile(S, 256)
    if tk is None:
        tk = _largest_divisor_tile(S, 512 if vmem_limit >= (96 << 20) else 256)
    assert S % tq == 0 and S % tk == 0, "seq_len must be divisible by the tiles"
    assert (tq == S or tq % 8 == 0) and (tk == S or tk % 8 == 0)

    def _attn_vmem(tq_, tk_):
        w_bufs = 1 if single_buf_w else 2
        return (2 * tq_ * D * 2                    # q tile (bf16, double-buf)
                + 2 * 2 * tk_ * D * 2              # k, v tiles
                + 2 * tq_ * D * 4                  # output tile (<= f32)
                + w_bufs * D * D * 2 + 2 * D * 4   # wo, bo
                + n_head * tq_ * (d_k + 2) * 4)    # f32 accumulators

    for _ in range(8):                             # shrink kv first, then q
        if _attn_vmem(tq, tk) <= 0.7 * vmem_limit:
            break
        if tk > 128:
            new_tk = _largest_divisor_tile(S, tk // 2)
            if new_tk < tk:
                tk = new_tk
                continue
        if tq > 128:
            new_tq = _largest_divisor_tile(S, tq // 2)
            if new_tq < tq:
                tq = new_tq
                continue
        break

    # ---- Weight prep: bf16 MXU operands; 1/sqrt(d_k) folded into Q proj ----
    wq = (params["wq"] * scale).astype(bf16)
    bq = params["bq"].astype(f32) * scale
    wk, wv, wo = (params[n].astype(bf16) for n in ("wk", "wv", "wo"))
    bk, bv, bo = (params[n].astype(f32) for n in ("bk", "bv", "bo"))

    # ---- Kernel 1: fused projections, head-major outputs -------------------
    # TODO(synk): very large d_model (fused weight > ~half of VMEM) would need
    # an output-axis (N) tiled projection; fall back to separate projections.
    def _fits(n_out):
        bufs = 1 if single_buf_w else 2
        return n_out * D * D * 2 * bufs <= 0.5 * vmem_limit

    if (query is key) and (key is value) and _fits(3):
        # Self-attention: one wide (D, 3D) matmul for Q|K|V.
        w_cat = jnp.concatenate([wq, wk, wv], axis=1)
        b_cat = jnp.concatenate([bq, bk, bv], axis=1)
        q_h, k_h, v_h = _project_heads(query, w_cat, b_cat, 3, n_head, tq,
                                       vmem_limit, single_buf_w)
    elif (key is value) and _fits(2):
        # Typical cross-attention: K and V share their input.
        (q_h,) = _project_heads(query, wq, bq, 1, n_head, tq,
                                vmem_limit, single_buf_w)
        k_h, v_h = _project_heads(key, jnp.concatenate([wk, wv], axis=1),
                                  jnp.concatenate([bk, bv], axis=1), 2,
                                  n_head, tq, vmem_limit, single_buf_w)
    else:
        (q_h,) = _project_heads(query, wq, bq, 1, n_head, tq,
                                vmem_limit, single_buf_w)
        (k_h,) = _project_heads(key, wk, bk, 1, n_head, tq,
                                vmem_limit, single_buf_w)
        (v_h,) = _project_heads(value, wv, bv, 1, n_head, tq,
                                vmem_limit, single_buf_w)

    # ---- Kernel 2: flash attention + head combine + output projection ------
    q_spec = pl.BlockSpec((pl.Squeezed(), n_head, tq, d_k),
                          lambda b, qi, ki: (b, 0, qi, 0))
    kv_spec = pl.BlockSpec((pl.Squeezed(), n_head, tk, d_k),
                           lambda b, qi, ki: (b, 0, ki, 0))
    wo_spec = _const_spec((D, D), single_buf_w)
    bo_spec = _const_spec((1, D), single_buf_w)
    out_spec = pl.BlockSpec((pl.Squeezed(), tq, D), lambda b, qi, ki: (b, qi, 0))

    return pl.pallas_call(
        _flash_attn_kernel,
        out_shape=jax.ShapeDtypeStruct((B, S, D), out_dtype),
        grid_spec=pltpu.PrefetchScalarGridSpec(
            num_scalar_prefetch=0,
            grid=(B, S // tq, S // tk),
            in_specs=[q_spec, kv_spec, kv_spec, wo_spec, bo_spec],
            out_specs=out_spec,
            scratch_shapes=[
                pltpu.VMEM((n_head, tq, 1), f32),    # running max
                pltpu.VMEM((n_head, tq, 1), f32),    # running denominator
                pltpu.VMEM((n_head, tq, d_k), f32),  # output accumulator
            ],
        ),
        # NOTE: the kv axis must remain the last, "arbitrary" axis.
        compiler_params=pltpu.CompilerParams(
            dimension_semantics=("parallel", "parallel", "arbitrary"),
            vmem_limit_bytes=vmem_limit),
    )(q_h, k_h, v_h, wo, bo)


# ---------------------------------------------------------------------------
# Pure-JAX reference (f32) matching the PyTorch module semantics.
# ---------------------------------------------------------------------------

def _reference(query, key, value, params, n_head):
    B, S, D = query.shape
    d_k = D // n_head

    def linear(x, w, b):
        return x @ w + b

    q = linear(query, params["wq"], params["bq"])
    k = linear(key, params["wk"], params["bk"])
    v = linear(value, params["wv"], params["bv"])

    def split(t):
        return t.reshape(B, S, n_head, d_k).transpose(0, 2, 1, 3)

    q, k, v = split(q), split(k), split(v)
    scores = jnp.einsum("bhqd,bhkd->bhqk", q, k) / math.sqrt(d_k)
    w = jax.nn.softmax(scores, axis=-1)
    out = jnp.einsum("bhqk,bhkd->bhqd", w, v)
    out = out.transpose(0, 2, 1, 3).reshape(B, S, D)
    return linear(out, params["wo"], params["bo"])


def _init_params(key, d_model):
    """Deterministic init mimicking PyTorch nn.Linear default (uniform +-1/sqrt(in))."""
    bound = 1.0 / math.sqrt(d_model)
    keys = jax.random.split(key, 8)
    names = ["wq", "bq", "wk", "bk", "wv", "bv", "wo", "bo"]
    params = {}
    for i, name in enumerate(names):
        shape = (d_model, d_model) if name.startswith("w") else (1, d_model)
        params[name] = jax.random.uniform(
            keys[i], shape, dtype=jnp.float32, minval=-bound, maxval=bound)
    return params


if __name__ == "__main__":
    B, S, D, H = 2, 16, 32, 4

    root = jax.random.PRNGKey(0)
    k_q, k_k, k_v, k_p = jax.random.split(root, 4)

    query = jax.random.normal(k_q, (B, S, D), dtype=jnp.float32)
    key_t = jax.random.normal(k_k, (B, S, D), dtype=jnp.float32)
    value = jax.random.normal(k_v, (B, S, D), dtype=jnp.float32)
    params = _init_params(k_p, D)

    # 1) Distinct q/k/v inputs: exercises the general projection path and the
    #    multi-KV-tile online softmax (tq=tk=8 -> 2 kv steps per q tile).
    out = multi_head_attention(query, key_t, value, params, H, tq=8, tk=8)
    out = jax.block_until_ready(out)
    ref = _reference(query, key_t, value, params, H)
    assert out.shape == (B, S, D)
    err = float(jnp.max(jnp.abs(out - ref)))
    assert jnp.allclose(out, ref, atol=3e-2, rtol=3e-2), (
        f"cross-attention mismatch vs reference (max abs err {err})")

    # 2) Self-attention (same array for q/k/v): exercises the fused (D, 3D)
    #    QKV projection and the single-KV-tile path with default tiles.
    out_sa = multi_head_attention(query, query, query, params, H)
    out_sa = jax.block_until_ready(out_sa)
    ref_sa = _reference(query, query, query, params, H)
    err_sa = float(jnp.max(jnp.abs(out_sa - ref_sa)))
    assert jnp.allclose(out_sa, ref_sa, atol=3e-2, rtol=3e-2), (
        f"self-attention mismatch vs reference (max abs err {err_sa})")

    print("KERNEL_OK")
</pallas_src>

<mosaic_0001>
module attributes {stable_mosaic.version = 11 : i64} {
  func.func @_proj_heads_kernel(%arg0: i32, %arg1: i32, %arg2: memref<1x8x32xf32, #tpu.memory_space<vmem>>, %arg3: memref<32x32xbf16, #tpu.memory_space<vmem>>, %arg4: memref<1x32xf32, #tpu.memory_space<vmem>>, %arg5: memref<1x4x8x8xbf16, #tpu.memory_space<vmem>>) attributes {dimension_semantics = [#tpu.dimension_semantics<parallel>, #tpu.dimension_semantics<parallel>], iteration_bounds = array<i64: 2, 2>, scalar_prefetch = 0 : i64, scratch_operands = 0 : i64, tpu.core_type = #tpu.core_type<tc>, window_params = [{transform_indices = @transform_0, window_bounds = array<i64: 1, 8, 32>}, {pipeline_mode = #tpu.pipeline_mode<synchronous>, transform_indices = @transform_1, window_bounds = array<i64: 32, 32>}, {pipeline_mode = #tpu.pipeline_mode<synchronous>, transform_indices = @transform_2, window_bounds = array<i64: 1, 32>}, {transform_indices = @transform_3, window_bounds = array<i64: 1, 4, 8, 8>}]} {
    %c0 = arith.constant 0 : index
    %c0_0 = arith.constant 0 : index
    %c0_1 = arith.constant 0 : index
    %0 = vector.load %arg2[%c0, %c0_0, %c0_1] : memref<1x8x32xf32, #tpu.memory_space<vmem>>, vector<1x8x32xf32>
    %1 = vector.shape_cast %0 : vector<1x8x32xf32> to vector<8x32xf32>
    %2 = arith.truncf %1 : vector<8x32xf32> to vector<8x32xbf16>
    %c0_2 = arith.constant 0 : index
    %c0_3 = arith.constant 0 : index
    %3 = vector.load %arg3[%c0_2, %c0_3] : memref<32x32xbf16, #tpu.memory_space<vmem>>, vector<32x32xbf16>
    %cst = arith.constant dense<0.000000e+00> : vector<8x32xf32>
    %4 = tpu.matmul %2, %3, %cst {dimension_numbers = #tpu.dot_dimension_numbers<[1], [0], [0], [1], [0, 0, 1, 1], [], []>} : vector<8x32xbf16>, vector<32x32xbf16>, vector<8x32xf32> -> vector<8x32xf32>
    %c0_4 = arith.constant 0 : index
    %c0_5 = arith.constant 0 : index
    %5 = vector.load %arg4[%c0_4, %c0_5] : memref<1x32xf32, #tpu.memory_space<vmem>>, vector<1x32xf32>
    %6 = vector.broadcast %5 : vector<1x32xf32> to vector<8x32xf32>
    %7 = arith.addf %4, %6 : vector<8x32xf32>
    %8 = vector.shape_cast %7 : vector<8x32xf32> to vector<8x4x8xf32>
    %9 = tpu.transpose %8, [1, 0, 2] : vector<8x4x8xf32> -> vector<4x8x8xf32>
    %10 = arith.truncf %9 : vector<4x8x8xf32> to vector<4x8x8xbf16>
    %c0_6 = arith.constant 0 : index
    %c0_7 = arith.constant 0 : index
    %c0_8 = arith.constant 0 : index
    %c0_9 = arith.constant 0 : index
    %11 = vector.load %arg5[%c0_6, %c0_7, %c0_8, %c0_9] : memref<1x4x8x8xbf16, #tpu.memory_space<vmem>>, vector<1x4x8x8xbf16>
    %12 = vector.shape_cast %11 : vector<1x4x8x8xbf16> to vector<4x8x8xbf16>
    %13 = vector.shape_cast %10 : vector<4x8x8xbf16> to vector<1x4x8x8xbf16>
    tpu.vector_store %arg5[%c0_6, %c0_7, %c0_8, %c0_9], %13 {strides = array<i32>} : memref<1x4x8x8xbf16, #tpu.memory_space<vmem>>, vector<1x4x8x8xbf16>,
    return
  }
  func.func @transform_0(%arg0: i32, %arg1: i32) -> (i32, i32, i32) {
    %c0_i32 = arith.constant 0 : i32
    %c0_i32_0 = arith.constant 0 : i32
    return %arg0, %arg1, %c0_i32 : i32, i32, i32
  }
  func.func @transform_1(%arg0: i32, %arg1: i32) -> (i32, i32) {
    %c0_i32 = arith.constant 0 : i32
    %c0_i32_0 = arith.constant 0 : i32
    %c0_i32_1 = arith.constant 0 : i32
    return %c0_i32, %c0_i32_0 : i32, i32
  }
  func.func @transform_2(%arg0: i32, %arg1: i32) -> (i32, i32) {
    %c0_i32 = arith.constant 0 : i32
    %c0_i32_0 = arith.constant 0 : i32
    %c0_i32_1 = arith.constant 0 : i32
    return %c0_i32, %c0_i32_0 : i32, i32
  }
  func.func @transform_3(%arg0: i32, %arg1: i32) -> (i32, i32, i32, i32) {
    %c0_i32 = arith.constant 0 : i32
    %c0_i32_0 = arith.constant 0 : i32
    %c0_i32_1 = arith.constant 0 : i32
    return %arg0, %c0_i32, %arg1, %c0_i32_0 : i32, i32, i32, i32
  }
}

</mosaic_0001>

<llo_original>
// kernel: tpu_custom_call.1
$region0: #{tpu_custom_call.1}
  #allocation0 [shape = 'u32[]', space=smem, size = 0x4, offset = 0x4, fixed_abs, tag = 'smem constant byte address 0x4 - core index']
  #allocation1 [shape = 'u32[144,128]{1,0:T(1,128)}', space=vmem, size = 0x12000, scoped, tag = 'internal scratch']
  %s0 = inlined_call_operand.hbm [shape: f32[2,16,32], index: 0, kind: input, shape index: {}]
  %s1 = inlined_call_operand.hbm [shape: bf16[32,32], index: 1, kind: input, shape index: {}]
  %s2 = inlined_call_operand.vmem [shape: f32[1,32], index: 2, kind: input, shape index: {}]
  %s3 = inlined_call_operand.vmem [shape: bf16[2,4,16,8], index: 3, kind: output, shape index: {}]
  %s4 = sld [smem:[#allocation0]]
  $region90: #{tpu_custom_call.1} parent=0
    _
  %s6 = ssub.s32 1, %s4
  %s7 = scalar_select 0, %s6, %s4
  $region1: #{tpu_custom_call.1} parent=0
    #allocation2 [shape = 'u8[8192]{0}', space=vmem, size = 0x2000, scoped, tag = 'input window, operand 0']
    #allocation3 [shape = 's32[2]{0}', space=sflag, size = 0x8, scoped, tag = 'scoped memory for tpu_custom_call.1']
    #allocation4 [shape = 'u8[8192]{0}', space=vmem, size = 0x2000, scoped, tag = 'input window, operand 1, single buffered']
    #allocation5 [shape = 's32[1]{0}', space=sflag, size = 0x4, scoped, tag = 'scoped memory for tpu_custom_call.1']
    #allocation6 [shape = 'u8[16384]{0}', space=vmem, size = 0x4000, scoped, tag = 'output window, operand 0']
    %8 = vsyncpa [#allocation3], 0
    %s9 = scalar_lea.sflag [#allocation3], 1
    %10 = vsyncpa %s9, 0
    %11 = vsyncpa [#allocation5], 0
    loop: start=0, step=1, limit=6
    $region2: #{tpu_custom_call.1} parent=1 // loop_pre_header
      _
    $region3: #{tpu_custom_call.1} parent=1 // loop_header
      %s13 = sphi 0, %s17
      %p14 = scmp.ge.s32.totalorder %s13, 6
      %s20 = sphi 0, %s32
      %s21 = sphi 0, %s28
      %s22 = sphi 0, %s20
      %s23 = sphi 0, %s21
      %s24 = sphi 0, %s22
      %s25 = sphi 0, %s23
      %s37 = sphi 0, %s39
      %s40 = sphi 0, %s37
      %s41 = sphi 0, %s40
      %s57 = sphi 0, %s41
      %s61 = sphi 0, %s61
      %s63 = sphi 0, %s61
      %s64 = sphi 0, %s63
      %s78 = sphi 0, %s64
      %s82 = sphi 0, %s82
      %s84 = sphi 0, %s82
      %s85 = sphi 0, %s84
      %s99 = sphi 0, %s85
      %s107 = sphi 0, %s109
      %s110 = sphi 0, %s107
      %s111 = sphi 0, %s110
      %s127 = sphi 0, %s111
    $region4: #{tpu_custom_call.1} parent=1 // loop_header_branch
      %16 = sbr.rel (%p14) target = $region8
    $region5: #{tpu_custom_call.1} parent=1 // loop_body
      %s18 = ssub.s32 %s13, 1
      %s19 = ssub.s32 %s13, 2
      %s26 = sadd.s32 1, %s21
      %p27 = scmp.ge.s32.totalorder %s26, 2
      %s28 = scalar_select %p27, 0, %s26
      %s29 = sadd.s32 1, %s20
      %s30 = scalar_select %p27, %s29, %s20
      %p31 = scmp.ge.s32.totalorder %s30, 2
      %s32 = scalar_select %p31, 0, %s30
      %s33 = ssub.s32 %s20, %s32
      %s34 = ssub.s32 %s21, %s28
      %s35 = sor.u32 %s33, %s34
      %p36 = scmp.eq.s32.totalorder %s35, 0
      %s38 = sadd.s32 %s37, 1
      %s39 = scalar_select %p36, %s37, %s38
      %p42 = pneg %p36
      %p43 = scmp.eq.s32.totalorder %s13, 3
      %p44 = por %p42, %p43
      %p45 = scmp.ne.s32.totalorder %s37, %s40
      %p46 = scmp.eq.s32.totalorder %s13, 0
      %p47 = por %p45, %p46
      %p48 = scmp.ne.s32.totalorder %s37, %s40
      %p49 = scmp.eq.s32.totalorder %s18, 3
      %p50 = por %p48, %p49
      %p51 = scmp.ne.s32.totalorder %s40, %s41
      %p52 = scmp.eq.s32.totalorder %s18, 0
      %p53 = por %p51, %p52
      %p54 = scmp.ne.s32.totalorder %s40, %s41
      %p55 = scmp.eq.s32.totalorder %s19, 3
      %p56 = por %p54, %p55
      %p58 = scmp.ne.s32.totalorder %s41, %s57
      %p59 = scmp.eq.s32.totalorder %s19, 0
      %p60 = por %p58, %p59
      %s62 = sadd.s32 %s61, 1
      %p65 = scmp.eq.s32.totalorder %s13, 3
      %p66 = scmp.ne.s32.totalorder %s61, %s63
      %p67 = scmp.eq.s32.totalorder %s13, 0
      %p68 = por %p66, %p67
      %p69 = scmp.ne.s32.totalorder %s61, %s63
      %p70 = scmp.eq.s32.totalorder %s18, 3
      %p71 = por %p69, %p70
      %p72 = scmp.ne.s32.totalorder %s63, %s64
      %p73 = scmp.eq.s32.totalorder %s18, 0
      %p74 = por %p72, %p73
      %p75 = scmp.ne.s32.totalorder %s63, %s64
      %p76 = scmp.eq.s32.totalorder %s19, 3
      %p77 = por %p75, %p76
      %p79 = scmp.ne.s32.totalorder %s64, %s78
      %p80 = scmp.eq.s32.totalorder %s19, 0
      %p81 = por %p79, %p80
      %s83 = sadd.s32 %s82, 1
      %p86 = scmp.eq.s32.totalorder %s13, 3
      %p87 = scmp.ne.s32.totalorder %s82, %s84
      %p88 = scmp.eq.s32.totalorder %s13, 0
      %p89 = por %p87, %p88
      %p90 = scmp.ne.s32.totalorder %s82, %s84
      %p91 = scmp.eq.s32.totalorder %s18, 3
      %p92 = por %p90, %p91
      %p93 = scmp.ne.s32.totalorder %s84, %s85
      %p94 = scmp.eq.s32.totalorder %s18, 0
      %p95 = por %p93, %p94
      %p96 = scmp.ne.s32.totalorder %s84, %s85
      %p97 = scmp.eq.s32.totalorder %s19, 3
      %p98 = por %p96, %p97
      %p100 = scmp.ne.s32.totalorder %s85, %s99
      %p101 = scmp.eq.s32.totalorder %s19, 0
      %p102 = por %p100, %p101
      %s103 = ssub.s32 %s20, %s32
      %s104 = ssub.s32 %s21, %s28
      %s105 = sor.u32 %s103, %s104
      %p106 = scmp.eq.s32.totalorder %s105, 0
      %s108 = sadd.s32 %s107, 1
      %s109 = scalar_select %p106, %s107, %s108
      %p112 = pneg %p106
      %p113 = scmp.eq.s32.totalorder %s13, 3
      %p114 = por %p112, %p113
      %p115 = scmp.ne.s32.totalorder %s107, %s110
      %p116 = scmp.eq.s32.totalorder %s13, 0
      %p117 = por %p115, %p116
      %p118 = scmp.ne.s32.totalorder %s107, %s110
      %p119 = scmp.eq.s32.totalorder %s18, 3
      %p120 = por %p118, %p119
      %p121 = scmp.ne.s32.totalorder %s110, %s111
      %p122 = scmp.eq.s32.totalorder %s18, 0
      %p123 = por %p121, %p122
      %p124 = scmp.ne.s32.totalorder %s110, %s111
      %p125 = scmp.eq.s32.totalorder %s19, 3
      %p126 = por %p124, %p125
      %p128 = scmp.ne.s32.totalorder %s111, %s127
      %p129 = scmp.eq.s32.totalorder %s19, 0
      %p130 = por %p128, %p129
      %p131 = scmp.le.s32.totalorder 1, %s13
      %p132 = scmp.lt.s32.totalorder %s13, 5
      %p133 = pnand %p131, %p132
      %p134 = pneg %p133
      // Predicated region
      $region9: #{tpu_custom_call.1} parent=5 // pred_check
        _
      $region10: #{tpu_custom_call.1} parent=5 // pred_check_branch
        %136 = sbr.rel (%p133) target = $region12
      $region11: #{tpu_custom_call.1} parent=5 // pred_region
        %s137 = ssub.s32 %s13, 1
        // Predicated region
        $region13: #{tpu_custom_call.1} parent=11 // pred_check
          %p138 = pneg %p74
        $region14: #{tpu_custom_call.1} parent=11 // pred_check_branch
          %140 = sbr.rel (%p138) target = $region16
        $region15: #{tpu_custom_call.1} parent=11 // pred_region
          %s142 = ssub.s32 256, 256
          %143 = vsyncadd [#allocation5], %s142
          %s144 = sshll.u32 [#allocation4], 4
          %s145 = int_to_ptr.vmem [resolvable:$true] %s144
          %150 = dma.hbm_to_vmem [thread:$0]  %s1, 256, %s145, [#allocation5], 64, 64, 4
        $region16: #{tpu_custom_call.1} parent=11 // pred_fallthru
          _
        // Predicated region
        $region17: #{tpu_custom_call.1} parent=11 // pred_check
          %p151 = pneg %p95
        $region18: #{tpu_custom_call.1} parent=11 // pred_check_branch
          %153 = sbr.rel (%p151) target = $region20
        $region19: #{tpu_custom_call.1} parent=11 // pred_region
          _
        $region20: #{tpu_custom_call.1} parent=11 // pred_fallthru
          _
      $region12: #{tpu_custom_call.1} parent=5 // pred_fallthru
        _
      %p154 = scmp.lt.s32.totalorder %s13, 4
      // Predicated region
      $region21: #{tpu_custom_call.1} parent=5 // pred_check
        %p155 = pneg %p154
      $region22: #{tpu_custom_call.1} parent=5 // pred_check_branch
        %157 = sbr.rel (%p155) target = $region24
      $region23: #{tpu_custom_call.1} parent=5 // pred_region
        // Predicated region
        $region25: #{tpu_custom_call.1} parent=23 // pred_check
          %p158 = pneg %p47
        $region26: #{tpu_custom_call.1} parent=23 // pred_check_branch
          %160 = sbr.rel (%p158) target = $region28
        $region27: #{tpu_custom_call.1} parent=23 // pred_region
          %s161 = sand.u32 %s37, 1
          %s162 = scalar_lea.sflag [#allocation3], %s161
          %s163 = sand.u32 %s37, 1
          %s164 = smul.addr %s163, 8
          %s165 = scalar_lea.vmem [#allocation2], %s164
          %s167 = ssub.s32 128, 128
          %168 = vsyncadd %s162, %s167
          %s169 = smul.addr %s20, 2
          %s170 = sadd.s32 %s21, %s169
          %s171 = smul.addr %s170, 128
          %s172 = scalar_lea.hbm %s0, %s171
          %s174 = sshll.u32 %s165, 4
          %s175 = int_to_ptr.vmem [resolvable:$true] %s174
          %177 = dma.hbm_to_vmem [thread:$0]  %s172, 128, %s175, %s162
        $region28: #{tpu_custom_call.1} parent=23 // pred_fallthru
          _
      $region24: #{tpu_custom_call.1} parent=5 // pred_fallthru
        _
      %p178 = scmp.le.s32.totalorder 1, %s13
      %p179 = scmp.lt.s32.totalorder %s13, 5
      %p180 = pnand %p178, %p179
      %p181 = pneg %p180
      // Predicated region
      $region29: #{tpu_custom_call.1} parent=5 // pred_check
        _
      $region30: #{tpu_custom_call.1} parent=5 // pred_check_branch
        %183 = sbr.rel (%p180) target = $region32
      $region31: #{tpu_custom_call.1} parent=5 // pred_region
        %s184 = ssub.s32 %s13, 1
        %s185 = sand.u32 %s40, 1
        %s186 = scalar_lea.sflag [#allocation3], %s185
        %s187 = sand.u32 %s40, 1
        %s188 = smul.addr %s187, 8
        %s189 = scalar_lea.vmem [#allocation2], %s188
        // Predicated region
        $region33: #{tpu_custom_call.1} parent=31 // pred_check
          %p190 = pneg %p53
        $region34: #{tpu_custom_call.1} parent=31 // pred_check_branch
          %192 = sbr.rel (%p190) target = $region36
        $region35: #{tpu_custom_call.1} parent=31 // pred_region
          %193 = dma.done %s186, 128
        $region36: #{tpu_custom_call.1} parent=31 // pred_fallthru
          _
        // Predicated region
        $region37: #{tpu_custom_call.1} parent=31 // pred_check
          %p194 = pneg %p74
        $region38: #{tpu_custom_call.1} parent=31 // pred_check_branch
          %196 = sbr.rel (%p194) target = $region40
        $region39: #{tpu_custom_call.1} parent=31 // pred_region
          %197 = dma.done [#allocation5], 256
        $region40: #{tpu_custom_call.1} parent=31 // pred_fallthru
          _
        %s198 = sand.u32 %s40, 1
        %s199 = scalar_lea.sflag [#allocation3], %s198
        %s200 = sand.u32 %s40, 1
        %s201 = smul.addr %s200, 8
        %s202 = scalar_lea.vmem [#allocation2], %s201
        %p203 = pneg %p53
        %p204 = pneg %p50
        %p205 = pneg %p74
        %p206 = pneg %p71
        %p207 = pneg %p95
        %p208 = pneg %p92
        %p209 = pneg %p123
        %p210 = pneg %p120
        %s211 = sand.u32 %s110, 1
        %s212 = sand.u32 %s110, 1
        %s213 = smul.addr %s212, 16
        %s214 = scalar_lea.vmem [#allocation6], %s213
        %v216 = vld [vmem:[%s189] sm:$0xff]
        %v217 = vpack.c.bf16 %v216, %v216
        %v218 = vld [vmem:[#allocation4] sm:$0xf]
        %v219 = vld [vmem:[#allocation4 + $0x4] sm:$0xf]
        %v220 = vld [vmem:[#allocation4 + $0x8] sm:$0xf]
        %v221 = vld [vmem:[#allocation4 + $0xc] sm:$0xf]
        %v222 = vld [vmem:[%s2] sm:$0x1]
        %v224 = vlaneseq
        %v225 = vshrl.u32 %v224, 7
        %v226 = vsub.s32 0, %v225
        %v227 = vrot.slane %v222, %v226
        %v233 = vunpack.c.l.b16 %v218
        %v234 = vunpack.c.l.b16 %v219
        %v235 = vunpack.c.l.b16 %v220
        %v236 = vunpack.c.l.b16 %v221
        %v237 = vpack.c.b16 %v234, %v233
        %v238 = vpack.c.b16 %v236, %v235
        %vm241 = vcmask 261120
        %v243 = vsel %vm241, %v217, 0
        %245 = vmatprep.subr.bf16.mxu0 0
        %246 = vmatpush1.bf16.msra.mxu0 %v237
        %247 = vmatprep.subr.bf16.mxu0 0
        %248 = vmatpush1.bf16.msra.mxu0 %v238
        %249 = vmatprep.subr.bf16.mxu0 0
        %250 = vmatpush1.bf16.msra.mxu0 0
        %251 = vmatprep.subr.bf16.mxu0 0
        %252 = vmatpush1.bf16.msra.mxu0 0
        %253 = vmatprep.subr.bf16.mxu0 0
        %254 = vmatpush1.bf16.msra.mxu0 0
        %255 = vmatprep.subr.bf16.mxu0 0
        %256 = vmatpush1.bf16.msra.mxu0 0
        %257 = vmatprep.subr.bf16.mxu0 0
        %258 = vmatpush1.bf16.msra.mxu0 0
        %259 = vmatprep.subr.bf16.mxu0 0
        %260 = vmatpush1.bf16.msra.mxu0 0
        %261 = vmatprep.subr.bf16.mxu0 0
        %262 = vmatpush1.bf16.msra.mxu0 0
        %263 = vmatprep.subr.bf16.mxu0 0
        %264 = vmatpush1.bf16.msra.mxu0 0
        %265 = vmatprep.subr.bf16.mxu0 0
        %266 = vmatpush1.bf16.msra.mxu0 0
        %267 = vmatprep.subr.bf16.mxu0 0
        %268 = vmatpush1.bf16.msra.mxu0 0
        %269 = vmatprep.subr.bf16.mxu0 0
        %270 = vmatpush1.bf16.msra.mxu0 0
        %271 = vmatprep.subr.bf16.mxu0 0
        %272 = vmatpush1.bf16.msra.mxu0 0
        %273 = vmatprep.subr.bf16.mxu0 0
        %274 = vmatpush1.bf16.msra.mxu0 0
        %275 = vmatprep.subr.bf16.mxu0 0
        %276 = vmatpush1.bf16.msra.mxu0 0
        %277 = vmatprep.mubr.bf16.mxu0 0
        %278 = vmatmul.mubr.bf16.gmra.mrb[0].mxu0 %v243
        %v279 = vpop.f32.mrb[0].mxu0
        %v280 = vadd.f32 %v227, %v279
        %v281 = vpop.f32.mrb[0].mxu0
        %v282 = vpop.f32.mrb[0].mxu0
        %v283 = vpop.f32.mrb[0].mxu0
        %284 = vdwg.mxu0
        %286 = vrot.lane.b32.xlu0 %v280, 120
        %v287 = vpop.permute.xlu0 %286
        %289 = vrot.lane.b32.xlu0 %v280, 112
        %v290 = vpop.permute.xlu0 %289
        %292 = vrot.lane.b32.xlu0 %v280, 104
        %v293 = vpop.permute.xlu0 %292
        %v295 = vcombine.low %v280, %v290
        %v296 = vcombine.high %v280, %v290
        %v298 = vunpack.c.l.s4 1983009808
        %v299 = vunpack.c.0.s8 %v298
        %v300 = vlaneseq
        %v301 = vshrl.u32 %v300, 7
        %v302 = vsub.s32 %v299, %v301
        %v303 = vrot.slane %v295, %v302
        %v305 = vunpack.c.l.s4 1983009808
        %v306 = vunpack.c.0.s8 %v305
        %v307 = vlaneseq
        %v308 = vshrl.u32 %v307, 7
        %v309 = vsub.s32 %v306, %v308
        %v310 = vrot.slane %v296, %v309
        %v311 = vcombine.low %v287, %v293
        %v312 = vcombine.high %v287, %v293
        %v314 = vunpack.c.l.s4 1983009808
        %v315 = vunpack.c.0.s8 %v314
        %v316 = vlaneseq
        %v317 = vshrl.u32 %v316, 7
        %v318 = vsub.s32 %v315, %v317
        %v319 = vrot.slane %v311, %v318
        %v321 = vunpack.c.l.s4 1983009808
        %v322 = vunpack.c.0.s8 %v321
        %v323 = vlaneseq
        %v324 = vshrl.u32 %v323, 7
        %v325 = vsub.s32 %v322, %v324
        %v326 = vrot.slane %v312, %v325
        %v327 = vcombine.low %v303, %v319
        %v328 = vcombine.high %v303, %v319
        %v330 = vunpack.c.l.s4 1934713408
        %v331 = vunpack.c.0.s8 %v330
        %v332 = vlaneseq
        %v333 = vshrl.u32 %v332, 7
        %v334 = vsub.s32 %v331, %v333
        %v335 = vrot.slane %v327, %v334
        %v337 = vunpack.c.l.s4 1934713408
        %v338 = vunpack.c.0.s8 %v337
        %v339 = vlaneseq
        %v340 = vshrl.u32 %v339, 7
        %v341 = vsub.s32 %v338, %v340
        %v342 = vrot.slane %v328, %v341
        %v343 = vcombine.low %v310, %v326
        %v344 = vcombine.high %v310, %v326
        %v346 = vunpack.c.l.s4 1934713408
        %v347 = vunpack.c.0.s8 %v346
        %v348 = vlaneseq
        %v349 = vshrl.u32 %v348, 7
        %v350 = vsub.s32 %v347, %v349
        %v351 = vrot.slane %v343, %v350
        %v353 = vunpack.c.l.s4 1934713408
        %v354 = vunpack.c.0.s8 %v353
        %v355 = vlaneseq
        %v356 = vshrl.u32 %v355, 7
        %v357 = vsub.s32 %v354, %v356
        %v358 = vrot.slane %v344, %v357
        %v359 = vcombine.high %v335, 0.0
        %v360 = vcombine.high %v342, 0.0
        %v361 = vcombine.high %v351, 0.0
        %v362 = vcombine.high %v358, 0.0
        %v363 = vcombine.low %v335, %v342
        %v365 = vunpack.c.l.s4 1983009808
        %v366 = vunpack.c.0.s8 %v365
        %v367 = vlaneseq
        %v368 = vshrl.u32 %v367, 7
        %v369 = vsub.s32 %v366, %v368
        %v370 = vrot.slane %v363, %v369
        %v371 = vcombine.low %v359, %v360
        %v373 = vunpack.c.l.s4 1983009808
        %v374 = vunpack.c.0.s8 %v373
        %v375 = vlaneseq
        %v376 = vshrl.u32 %v375, 7
        %v377 = vsub.s32 %v374, %v376
        %v378 = vrot.slane %v371, %v377
        %v379 = vcombine.low %v351, %v358
        %v381 = vunpack.c.l.s4 1983009808
        %v382 = vunpack.c.0.s8 %v381
        %v383 = vlaneseq
        %v384 = vshrl.u32 %v383, 7
        %v385 = vsub.s32 %v382, %v384
        %v386 = vrot.slane %v379, %v385
        %v387 = vcombine.low %v361, %v362
        %v389 = vunpack.c.l.s4 1983009808
        %v390 = vunpack.c.0.s8 %v389
        %v391 = vlaneseq
        %v392 = vshrl.u32 %v391, 7
        %v393 = vsub.s32 %v390, %v392
        %v394 = vrot.slane %v387, %v393
        %v395 = vcombine.low %v370, %v378
        %v396 = vcombine.high %v370, %v378
        %v398 = vunpack.c.l.s4 1934713408
        %v399 = vunpack.c.0.s8 %v398
        %v400 = vlaneseq
        %v401 = vshrl.u32 %v400, 7
        %v402 = vsub.s32 %v399, %v401
        %v403 = vrot.slane %v395, %v402
        %v405 = vunpack.c.l.s4 1934713408
        %v406 = vunpack.c.0.s8 %v405
        %v407 = vlaneseq
        %v408 = vshrl.u32 %v407, 7
        %v409 = vsub.s32 %v406, %v408
        %v410 = vrot.slane %v396, %v409
        %v411 = vcombine.low %v386, %v394
        %v412 = vcombine.high %v386, %v394
        %v414 = vunpack.c.l.s4 1934713408
        %v415 = vunpack.c.0.s8 %v414
        %v416 = vlaneseq
        %v417 = vshrl.u32 %v416, 7
        %v418 = vsub.s32 %v415, %v417
        %v419 = vrot.slane %v411, %v418
        %v421 = vunpack.c.l.s4 1934713408
        %v422 = vunpack.c.0.s8 %v421
        %v423 = vlaneseq
        %v424 = vshrl.u32 %v423, 7
        %v425 = vsub.s32 %v422, %v424
        %v426 = vrot.slane %v412, %v425
        %v427 = vcombine.low %v403, %v419
        %v428 = vcombine.high %v403, %v419
        %v429 = vcombine.low %v410, %v426
        %v430 = vcombine.high %v410, %v426
        %v431 = vpack.c.bf16 %v427, %v427
        %v432 = vpack.c.bf16 %v428, %v428
        %v433 = vpack.c.bf16 %v429, %v429
        %v434 = vpack.c.bf16 %v430, %v430
        %vm435 = vcmask 60416
        %436 = vst.msk [vmem:[%s214] sm:$0xf] %vm435, %v431
        %437 = vst.msk [vmem:[%s214 + $0x4] sm:$0xf] %vm435, %v432
        %438 = vst.msk [vmem:[%s214 + $0x8] sm:$0xf] %vm435, %v433
        %439 = vst.msk [vmem:[%s214 + $0xc] sm:$0xf] %vm435, %v434
        %s440 = sand.u32 %s110, 1
        %s441 = sand.u32 %s110, 1
        %s442 = smul.addr %s441, 16
        %s443 = scalar_lea.vmem [#allocation6], %s442
        // Predicated region
        $region41: #{tpu_custom_call.1} parent=31 // pred_check
          %p444 = pneg %p120
        $region42: #{tpu_custom_call.1} parent=31 // pred_check_branch
          %446 = sbr.rel (%p444) target = $region44
        $region43: #{tpu_custom_call.1} parent=31 // pred_region
          %s447 = smul.addr %s22, 8
          %s448 = sadd.s32 %s23, %s447
          %s449 = smul.addr %s448, 4
          %s450 = scalar_lea.vmem %s3, %s449
          // Predicated region
          $region45: #{tpu_custom_call.1} parent=43 // pred_check
            _
          $region46: #{tpu_custom_call.1} parent=43 // pred_check_branch
            %452 = sbr.rel (0) target = $region48
          $region47: #{tpu_custom_call.1} parent=43 // pred_region
            // Predicated region
            $region49: #{tpu_custom_call.1} parent=47 // pred_check
              _
            $region50: #{tpu_custom_call.1} parent=47 // pred_check_branch
              %454 = sbr.rel target = $region52
            $region51: #{tpu_custom_call.1} parent=47 // pred_region
              // Predicated region
              $region64: #{tpu_custom_call.1} parent=51 // pred_check
                _
              $region65: #{tpu_custom_call.1} parent=51 // pred_check_branch
                %475 = sbr.rel (0) target = $region67
              $region66: #{tpu_custom_call.1} parent=51 // pred_region
                loop: start=0, step=1, limit=1
                $region68: #{tpu_custom_call.1} parent=66 // loop_pre_header
                  _
                $region69: #{tpu_custom_call.1} parent=66 // loop_header
                  %s477 = sphi 0, %s481
                  %p478 = scmp.ge.s32.totalorder %s477, 1
                  %s482 = sphi %s443, %s443
                  %s483 = sphi %s450, %s450
                $region70: #{tpu_custom_call.1} parent=66 // loop_header_branch
                  %480 = sbr.rel (%p478) target = $region74
                $region71: #{tpu_custom_call.1} parent=66 // loop_body
                  _
                $region72: #{tpu_custom_call.1} parent=66 // loop_footer
                  %s481 = sadd.s32 1, %s477
                $region73: #{tpu_custom_call.1} parent=66 // loop_footer_branch
                  %476 = sbr.rel target = $region69
                $region74: #{tpu_custom_call.1} parent=66 // loop_exit
                  _
                loop: start=0, step=1, limit=1
                $region75: #{tpu_custom_call.1} parent=66 // loop_pre_header
                  _
                $region76: #{tpu_custom_call.1} parent=66 // loop_header
                  %s486 = sphi 0, %s490
                  %p487 = scmp.ge.s32.totalorder %s486, 1
                  %s491 = sphi %s443, %s443
                  %s492 = sphi %s450, %s450
                $region77: #{tpu_custom_call.1} parent=66 // loop_header_branch
                  %489 = sbr.rel (%p487) target = $region81
                $region78: #{tpu_custom_call.1} parent=66 // loop_body
                  %v493 = vld [vmem:[%s491] sm:$0xf]
                  %494 = vst [vmem:[%s492] sm:$0xf] %v493
                  %v495 = vld [vmem:[%s491 + $0x4] sm:$0xf]
                  %496 = vst [vmem:[%s492 + $0x8] sm:$0xf] %v495
                  %v497 = vld [vmem:[%s491 + $0x8] sm:$0xf]
                  %498 = vst [vmem:[%s492 + $0x10] sm:$0xf] %v497
                  %v499 = vld [vmem:[%s491 + $0xc] sm:$0xf]
                  %500 = vst [vmem:[%s492 + $0x18] sm:$0xf] %v499
                $region79: #{tpu_custom_call.1} parent=66 // loop_footer
                  %s490 = sadd.s32 1, %s486
                $region80: #{tpu_custom_call.1} parent=66 // loop_footer_branch
                  %485 = sbr.rel target = $region76
                $region81: #{tpu_custom_call.1} parent=66 // loop_exit
                  _
              $region67: #{tpu_custom_call.1} parent=51 // pred_fallthru
                _
            $region52: #{tpu_custom_call.1} parent=47 // pred_fallthru
              _
            // Predicated region
            $region53: #{tpu_custom_call.1} parent=47 // pred_check
              _
            $region54: #{tpu_custom_call.1} parent=47 // pred_check_branch
              %456 = sbr.rel (0) target = $region56
            $region55: #{tpu_custom_call.1} parent=47 // pred_region
              loop: start=0, step=1, limit=1
              $region57: #{tpu_custom_call.1} parent=55 // loop_pre_header
                _
              $region58: #{tpu_custom_call.1} parent=55 // loop_header
                %s459 = sphi 0, %s463
                %p460 = scmp.ge.s32.totalorder %s459, 1
                %s464 = sphi %s443, %s443
                %s465 = sphi %s450, %s450
              $region59: #{tpu_custom_call.1} parent=55 // loop_header_branch
                %462 = sbr.rel (%p460) target = $region63
              $region60: #{tpu_custom_call.1} parent=55 // loop_body
                %v466 = vld [vmem:[%s464] sm:$0xf]
                %467 = vst [vmem:[%s465] sm:$0xf] %v466
                %v468 = vld [vmem:[%s464 + $0x4] sm:$0xf]
                %469 = vst [vmem:[%s465 + $0x8] sm:$0xf] %v468
                %v470 = vld [vmem:[%s464 + $0x8] sm:$0xf]
                %471 = vst [vmem:[%s465 + $0x10] sm:$0xf] %v470
                %v472 = vld [vmem:[%s464 + $0xc] sm:$0xf]
                %473 = vst [vmem:[%s465 + $0x18] sm:$0xf] %v472
              $region61: #{tpu_custom_call.1} parent=55 // loop_footer
                %s463 = sadd.s32 1, %s459
              $region62: #{tpu_custom_call.1} parent=55 // loop_footer_branch
                %458 = sbr.rel target = $region58
              $region63: #{tpu_custom_call.1} parent=55 // loop_exit
                _
            $region56: #{tpu_custom_call.1} parent=47 // pred_fallthru
              _
          $region48: #{tpu_custom_call.1} parent=43 // pred_fallthru
            _
          %501 = vnop
        $region44: #{tpu_custom_call.1} parent=31 // pred_fallthru
          _
      $region32: #{tpu_custom_call.1} parent=5 // pred_fallthru
        _
      %p502 = scmp.le.s32.totalorder 2, %s13
      // Predicated region
      $region82: #{tpu_custom_call.1} parent=5 // pred_check
        %p503 = pneg %p502
      $region83: #{tpu_custom_call.1} parent=5 // pred_check_branch
        %505 = sbr.rel (%p503) target = $region85
      $region84: #{tpu_custom_call.1} parent=5 // pred_region
        %s506 = ssub.s32 %s13, 2
        // Predicated region
        $region86: #{tpu_custom_call.1} parent=84 // pred_check
          %p507 = pneg %p126
        $region87: #{tpu_custom_call.1} parent=84 // pred_check_branch
          %509 = sbr.rel (%p507) target = $region89
        $region88: #{tpu_custom_call.1} parent=84 // pred_region
          %s510 = sand.u32 %s111, 1
          %s511 = sand.u32 %s111, 1
          %s512 = smul.addr %s511, 16
          %s513 = scalar_lea.vmem [#allocation6], %s512
        $region89: #{tpu_custom_call.1} parent=84 // pred_fallthru
          _
      $region85: #{tpu_custom_call.1} parent=5 // pred_fallthru
        _
    $region6: #{tpu_custom_call.1} parent=1 // loop_footer
      %s17 = sadd.s32 1, %s13
    $region7: #{tpu_custom_call.1} parent=1 // loop_footer_branch
      %12 = sbr.rel target = $region3
    $region8: #{tpu_custom_call.1} parent=1 // loop_exit
      _
    %514 = vsyncpa [#allocation3], 1
    %s515 = scalar_lea.sflag [#allocation3], 1
    %516 = vsyncpa %s515, 1
    %517 = vsyncpa [#allocation5], 1

</llo_original>
